<compile_context>
chip_gen: v7x
topology: tpu7x:2x2x1
jax: 0.10.0
libtpu: 0.0.40
codegen_flags: <defaults>
</compile_context>

<pallas_src>
import functools

import jax
import jax.numpy as jnp
import numpy as np
from jax import lax
from jax.experimental import pallas as pl
from jax.experimental.pallas import tpu as pltpu

# WingLoss hyper-parameters (match the PyTorch __init__ defaults).
W_PARAM = 10.0
E_PARAM = 2.0
INV_E = 1.0 / E_PARAM
C_PARAM = W_PARAM - W_PARAM * float(np.log(1.0 + W_PARAM / E_PARAM))

LANES = 128            # vreg lane width (last dim of every block)
MAX_BLOCK_ROWS = 2048  # sublane rows per grid step (f32: 1 MiB / input block)
NUM_CORES = 2          # leading "parallel" grid axis (both TCs on v7x)


def _round_up(a, b):
    return (a + b - 1) // b * b


def _wing_loss_kernel(x_ref, t_ref, o_ref, *, block_rows, steps_per_core,
                      valid_rows):
    """Elementwise wing loss, folded into an (8, 128) accumulator per core."""
    c = pl.program_id(0)   # parallel (per-core) axis
    i = pl.program_id(1)   # sequential reduction axis

    @pl.when(i == 0)
    def _():
        o_ref[...] = jnp.zeros_like(o_ref)

    x = x_ref[...].astype(jnp.float32)
    t = t_ref[...].astype(jnp.float32)

    # Mask rows beyond the logical array extent (partial last block and any
    # fully-redundant steps of the second core).  t = -1 => weight 0 => loss 0.
    start_row = (c * steps_per_core + i) * block_rows
    row_ids = start_row + lax.broadcasted_iota(jnp.int32, x.shape, 0)
    valid = row_ids < valid_rows
    x = jnp.where(valid, x, 0.0)
    t = jnp.where(valid, t, -1.0)

    # weight = 0 where target == -1 (ignored landmarks), else 1.
    # Note: any legitimate target exactly equal to -1.0 is treated as
    # "ignore" -- identical to the PyTorch module's semantics.
    abs_diff = jnp.where(t == -1.0, 0.0, jnp.abs(x - t))
    y = jnp.where(abs_diff < W_PARAM,
                  W_PARAM * jnp.log1p(abs_diff * INV_E),
                  abs_diff - C_PARAM)

    # Fold (block_rows, 128) -> (8, 128): pure vreg-wise VPU adds, no XLU.
    o_ref[...] += y.reshape(block_rows // 8, 8, LANES).sum(axis=0)


@jax.jit
def wing_loss(x, t):
    """Pallas WingLoss: returns a scalar f32 equal to the PyTorch forward."""
    assert x.shape == t.shape, "x and t must have the same shape"

    xf = x.reshape(-1)          # native dtype; cast happens inside the kernel
    tf = t.reshape(-1)
    n = xf.shape[0]

    # Only the lane dimension ever needs padding (to a multiple of 128); the
    # padded targets are -1 so they contribute exactly zero loss.  For common
    # shapes (n % 128 == 0, as in the demo) no copy happens at all.
    n_pad = (-n) % LANES
    if n_pad:
        xf = jnp.concatenate([xf, jnp.zeros((n_pad,), xf.dtype)])
        tf = jnp.concatenate([tf, jnp.full((n_pad,), -1, tf.dtype)])

    rows = (n + n_pad) // LANES
    x2 = xf.reshape(rows, LANES)
    t2 = tf.reshape(rows, LANES)

    # Largest tile that fits comfortably in VMEM (<= ~4 MiB of double-buffered
    # f32 inputs: fine vs v5e's 16 MiB scoped default and v7x's 64 MiB
    # physical) without vastly exceeding the input.  Multiple of 16 keeps
    # bf16 sublane packing happy if native-dtype inputs are bf16.
    block_rows = min(MAX_BLOCK_ROWS, _round_up(rows, 16))
    total_steps = (rows + block_rows - 1) // block_rows
    steps_per_core = (total_steps + NUM_CORES - 1) // NUM_CORES

    def in_index_map(c, i):
        # Clamp so redundant steps of the second core always map to a valid
        # block; their contribution is masked to zero inside the kernel.
        return (jnp.minimum(c * steps_per_core + i, total_steps - 1), 0)

    kernel = functools.partial(
        _wing_loss_kernel,
        block_rows=block_rows,
        steps_per_core=steps_per_core,
        valid_rows=rows,
    )

    partials = pl.pallas_call(
        kernel,
        out_shape=jax.ShapeDtypeStruct((NUM_CORES, 8, LANES), jnp.float32),
        grid_spec=pltpu.PrefetchScalarGridSpec(
            num_scalar_prefetch=0,
            grid=(NUM_CORES, steps_per_core),
            in_specs=[
                pl.BlockSpec((block_rows, LANES), in_index_map),
                pl.BlockSpec((block_rows, LANES), in_index_map),
            ],
            # One resident (8, 128) accumulator block per core (axis 0 is
            # squeezed out of the kernel ref).
            out_specs=pl.BlockSpec((None, 8, LANES), lambda c, i: (c, 0, 0)),
        ),
        compiler_params=pltpu.CompilerParams(
            dimension_semantics=("parallel", "arbitrary"),
        ),
    )(x2, t2)

    # Tiny final reduce (NUM_CORES x 8 x 128 elements) outside the kernel.
    return jnp.sum(partials)


def _wing_loss_ref(x, t):
    """Pure-JAX reference mirroring the PyTorch forward."""
    x = x.astype(jnp.float32)
    t = t.astype(jnp.float32)
    weight = jnp.where(t == -1.0, 0.0, 1.0)
    diff = weight * (x - t)
    abs_diff = jnp.abs(diff)
    flag = (abs_diff < W_PARAM).astype(jnp.float32)
    y = flag * W_PARAM * jnp.log1p(abs_diff / E_PARAM) \
        + (1.0 - flag) * (abs_diff - C_PARAM)
    return jnp.sum(y)


if __name__ == "__main__":
    key = jax.random.PRNGKey(0)
    k1, k2 = jax.random.split(key)

    # Small NCHW-shaped predictions / targets (e.g. landmark heatmaps).
    shape = (2, 4, 16, 16)
    x = jax.random.normal(k1, shape, dtype=jnp.float32) * 3.0
    t = jax.random.normal(k2, shape, dtype=jnp.float32) * 3.0
    # Mark some targets as ignored (exactly -1) to exercise the weight mask.
    mask = jax.random.bernoulli(jax.random.PRNGKey(42), 0.1, shape)
    t = jnp.where(mask, -1.0, t)

    out = wing_loss(x, t)
    jax.block_until_ready(out)

    ref = _wing_loss_ref(x, t)
    np.testing.assert_allclose(np.asarray(out), np.asarray(ref),
                               rtol=1e-5, atol=1e-3)
    print("KERNEL_OK")
</pallas_src>

<mosaic_0001>
module attributes {stable_mosaic.version = 11 : i64} {
  func.func @_wing_loss_kernel(%arg0: i32, %arg1: i32, %arg2: memref<16x128xf32, #tpu.memory_space<vmem>>, %arg3: memref<16x128xf32, #tpu.memory_space<vmem>>, %arg4: memref<1x8x128xf32, #tpu.memory_space<vmem>>) attributes {dimension_semantics = [#tpu.dimension_semantics<parallel>, #tpu.dimension_semantics<arbitrary>], iteration_bounds = array<i64: 2, 1>, scalar_prefetch = 0 : i64, scratch_operands = 0 : i64, tpu.core_type = #tpu.core_type<tc>, window_params = [{transform_indices = @transform_0, window_bounds = array<i64: 16, 128>}, {transform_indices = @transform_1, window_bounds = array<i64: 16, 128>}, {transform_indices = @transform_2, window_bounds = array<i64: 1, 8, 128>}]} {
    %c0_i32 = arith.constant 0 : i32
    %0 = arith.cmpi eq, %arg1, %c0_i32 : i32
    %1 = arith.extui %0 : i1 to i32
    %c0_i32_0 = arith.constant 0 : i32
    %2 = arith.cmpi ne, %1, %c0_i32_0 : i32
    scf.if %2 {
      %cst_19 = arith.constant 0.000000e+00 : f32
      %41 = vector.broadcast %cst_19 : f32 to vector<8x128xf32>
      %c0_20 = arith.constant 0 : index
      %c0_21 = arith.constant 0 : index
      %c0_22 = arith.constant 0 : index
      %42 = vector.load %arg4[%c0_20, %c0_21, %c0_22] : memref<1x8x128xf32, #tpu.memory_space<vmem>>, vector<1x8x128xf32>
      %43 = vector.shape_cast %42 : vector<1x8x128xf32> to vector<8x128xf32>
      %44 = vector.shape_cast %41 : vector<8x128xf32> to vector<1x8x128xf32>
      tpu.vector_store %arg4[%c0_20, %c0_21, %c0_22], %44 {strides = array<i32>} : memref<1x8x128xf32, #tpu.memory_space<vmem>>, vector<1x8x128xf32>,
    } else {
    }
    %c0 = arith.constant 0 : index
    %c0_1 = arith.constant 0 : index
    %3 = vector.load %arg2[%c0, %c0_1] : memref<16x128xf32, #tpu.memory_space<vmem>>, vector<16x128xf32>
    %c0_2 = arith.constant 0 : index
    %c0_3 = arith.constant 0 : index
    %4 = vector.load %arg3[%c0_2, %c0_3] : memref<16x128xf32, #tpu.memory_space<vmem>>, vector<16x128xf32>
    %c1_i32 = arith.constant 1 : i32
    %5 = arith.muli %arg0, %c1_i32 : i32
    %6 = arith.addi %5, %arg1 : i32
    %c16_i32 = arith.constant 16 : i32
    %7 = arith.muli %6, %c16_i32 : i32
    %8 = tpu.iota {dimensions = array<i32: 0>} : vector<16x128xi32>
    %9 = vector.broadcast %7 : i32 to vector<16x128xi32>
    %10 = arith.addi %9, %8 : vector<16x128xi32>
    %c16_i32_4 = arith.constant 16 : i32
    %11 = vector.broadcast %c16_i32_4 : i32 to vector<16x128xi32>
    %12 = arith.cmpi slt, %10, %11 : vector<16x128xi32>
    %cst = arith.constant 0.000000e+00 : f32
    %13 = vector.broadcast %cst : f32 to vector<16x128xf32>
    %14 = arith.select %12, %3, %13 : vector<16x128xi1>, vector<16x128xf32>
    %cst_5 = arith.constant -1.000000e+00 : f32
    %15 = vector.broadcast %cst_5 : f32 to vector<16x128xf32>
    %16 = arith.select %12, %4, %15 : vector<16x128xi1>, vector<16x128xf32>
    %cst_6 = arith.constant -1.000000e+00 : f32
    %17 = vector.broadcast %cst_6 : f32 to vector<16x128xf32>
    %18 = arith.cmpf oeq, %16, %17 : vector<16x128xf32>
    %19 = arith.subf %14, %16 : vector<16x128xf32>
    %20 = math.absf %19 : vector<16x128xf32>
    %cst_7 = arith.constant 0.000000e+00 : f32
    %21 = vector.broadcast %cst_7 : f32 to vector<16x128xf32>
    %22 = arith.select %18, %21, %20 : vector<16x128xi1>, vector<16x128xf32>
    %cst_8 = arith.constant 1.000000e+01 : f32
    %23 = vector.broadcast %cst_8 : f32 to vector<16x128xf32>
    %24 = arith.cmpf olt, %22, %23 : vector<16x128xf32>
    %cst_9 = arith.constant 5.000000e-01 : f32
    %25 = vector.broadcast %cst_9 : f32 to vector<16x128xf32>
    %26 = arith.mulf %22, %25 : vector<16x128xf32>
    %27 = math.log1p %26 : vector<16x128xf32>
    %cst_10 = arith.constant 1.000000e+01 : f32
    %28 = vector.broadcast %cst_10 : f32 to vector<16x128xf32>
    %29 = arith.mulf %28, %27 : vector<16x128xf32>
    %cst_11 = arith.constant -7.9175949 : f32
    %30 = vector.broadcast %cst_11 : f32 to vector<16x128xf32>
    %31 = arith.subf %22, %30 : vector<16x128xf32>
    %32 = arith.select %24, %29, %31 : vector<16x128xi1>, vector<16x128xf32>
    %c0_12 = arith.constant 0 : index
    %c0_13 = arith.constant 0 : index
    %c0_14 = arith.constant 0 : index
    %33 = vector.load %arg4[%c0_12, %c0_13, %c0_14] : memref<1x8x128xf32, #tpu.memory_space<vmem>>, vector<1x8x128xf32>
    %34 = vector.shape_cast %33 : vector<1x8x128xf32> to vector<8x128xf32>
    %35 = vector.shape_cast %32 : vector<16x128xf32> to vector<2x8x128xf32>
    %cst_15 = arith.constant dense<0.000000e+00> : vector<8x128xf32>
    %36 = vector.multi_reduction <add>, %35, %cst_15 [0] : vector<2x8x128xf32> to vector<8x128xf32>
    %37 = arith.addf %34, %36 : vector<8x128xf32>
    %c0_16 = arith.constant 0 : index
    %c0_17 = arith.constant 0 : index
    %c0_18 = arith.constant 0 : index
    %38 = vector.load %arg4[%c0_16, %c0_17, %c0_18] : memref<1x8x128xf32, #tpu.memory_space<vmem>>, vector<1x8x128xf32>
    %39 = vector.shape_cast %38 : vector<1x8x128xf32> to vector<8x128xf32>
    %40 = vector.shape_cast %37 : vector<8x128xf32> to vector<1x8x128xf32>
    tpu.vector_store %arg4[%c0_16, %c0_17, %c0_18], %40 {strides = array<i32>} : memref<1x8x128xf32, #tpu.memory_space<vmem>>, vector<1x8x128xf32>,
    return
  }
  func.func @transform_0(%arg0: i32, %arg1: i32) -> (i32, i32) {
    %c1_i32 = arith.constant 1 : i32
    %0 = arith.muli %arg0, %c1_i32 : i32
    %1 = arith.addi %0, %arg1 : i32
    %c0_i32 = arith.constant 0 : i32
    %2 = arith.minsi %1, %c0_i32 : i32
    %c0_i32_0 = arith.constant 0 : i32
    %c0_i32_1 = arith.constant 0 : i32
    return %2, %c0_i32_0 : i32, i32
  }
  func.func @transform_1(%arg0: i32, %arg1: i32) -> (i32, i32) {
    %c1_i32 = arith.constant 1 : i32
    %0 = arith.muli %arg0, %c1_i32 : i32
    %1 = arith.addi %0, %arg1 : i32
    %c0_i32 = arith.constant 0 : i32
    %2 = arith.minsi %1, %c0_i32 : i32
    %c0_i32_0 = arith.constant 0 : i32
    %c0_i32_1 = arith.constant 0 : i32
    return %2, %c0_i32_0 : i32, i32
  }
  func.func @transform_2(%arg0: i32, %arg1: i32) -> (i32, i32, i32) {
    %c0_i32 = arith.constant 0 : i32
    %c0_i32_0 = arith.constant 0 : i32
    %c0_i32_1 = arith.constant 0 : i32
    return %arg0, %c0_i32, %c0_i32_0 : i32, i32, i32
  }
}

</mosaic_0001>

<llo_original>
// kernel: wing_loss.1
$region0: #{wing_loss.1}
  #allocation0 [shape = 'u32[]', space=smem, size = 0x4, offset = 0x4, fixed_abs, tag = 'smem constant byte address 0x4 - core index']
  #allocation1 [shape = 'u32[144,128]{1,0:T(1,128)}', space=vmem, size = 0x12000, scoped, tag = 'internal scratch']
  %s0 = inlined_call_operand.vmem [shape: f32[16,128], index: 0, kind: input, shape index: {}]
  %s1 = inlined_call_operand.vmem [shape: f32[16,128], index: 1, kind: input, shape index: {}]
  %s2 = inlined_call_operand.vmem [shape: f32[2,8,128], index: 2, kind: output, shape index: {}]
  %s3 = sld [smem:[#allocation0]]
  $region45: #{wing_loss.1} parent=0
    _
  %s5 = ssub.s32 1, %s3
  %s6 = scalar_select 0, %s5, %s3
  loop: start=0, step=1, limit=4
  $region2: #{wing_loss.1} parent=0 // loop_pre_header
    _
  $region3: #{wing_loss.1} parent=0 // loop_header
    %s8 = sphi 0, %s12
    %p9 = scmp.ge.s32.totalorder %s8, 4
    %s15 = sphi 0, %s27
    %s16 = sphi 0, %s23
    %s17 = sphi 0, %s15
    %s18 = sphi 0, %s16
    %s19 = sphi 0, %s17
    %s20 = sphi 0, %s18
    %s36 = sphi 0, %s38
    %s39 = sphi 0, %s36
    %s40 = sphi 0, %s39
    %s56 = sphi 0, %s40
    %s68 = sphi 0, %s70
    %s71 = sphi 0, %s68
    %s72 = sphi 0, %s71
    %s88 = sphi 0, %s72
    %s94 = sphi 0, %s96
    %s97 = sphi 0, %s94
    %s98 = sphi 0, %s97
    %s114 = sphi 0, %s98
  $region4: #{wing_loss.1} parent=0 // loop_header_branch
    %11 = sbr.rel (%p9) target = $region8
  $region5: #{wing_loss.1} parent=0 // loop_body
    %s13 = ssub.s32 %s8, 1
    %s14 = ssub.s32 %s8, 2
    %s21 = sadd.s32 1, %s16
    %p22 = scmp.ge.s32.totalorder %s21, 1
    %s23 = scalar_select %p22, 0, %s21
    %s24 = sadd.s32 1, %s15
    %s25 = scalar_select %p22, %s24, %s15
    %p26 = scmp.ge.s32.totalorder %s25, 2
    %s27 = scalar_select %p26, 0, %s25
    %s28 = sadd.s32 %s15, %s16
    %p29 = scmp.lt.s32.totalorder %s28, 0
    %s30 = scalar_select %p29, %s28, 0
    %s31 = sadd.s32 %s27, %s23
    %p32 = scmp.lt.s32.totalorder %s31, 0
    %s33 = scalar_select %p32, %s31, 0
    %s34 = ssub.s32 %s30, %s33
    %p35 = scmp.eq.s32.totalorder %s34, 0
    %s37 = sadd.s32 %s36, 1
    %s38 = scalar_select %p35, %s36, %s37
    %p41 = pneg %p35
    %p42 = scmp.eq.s32.totalorder %s8, 1
    %p43 = por %p41, %p42
    %p44 = scmp.ne.s32.totalorder %s36, %s39
    %p45 = scmp.eq.s32.totalorder %s8, 0
    %p46 = por %p44, %p45
    %p47 = scmp.ne.s32.totalorder %s36, %s39
    %p48 = scmp.eq.s32.totalorder %s13, 1
    %p49 = por %p47, %p48
    %p50 = scmp.ne.s32.totalorder %s39, %s40
    %p51 = scmp.eq.s32.totalorder %s13, 0
    %p52 = por %p50, %p51
    %p53 = scmp.ne.s32.totalorder %s39, %s40
    %p54 = scmp.eq.s32.totalorder %s14, 1
    %p55 = por %p53, %p54
    %p57 = scmp.ne.s32.totalorder %s40, %s56
    %p58 = scmp.eq.s32.totalorder %s14, 0
    %p59 = por %p57, %p58
    %s60 = sadd.s32 %s15, %s16
    %p61 = scmp.lt.s32.totalorder %s60, 0
    %s62 = scalar_select %p61, %s60, 0
    %s63 = sadd.s32 %s27, %s23
    %p64 = scmp.lt.s32.totalorder %s63, 0
    %s65 = scalar_select %p64, %s63, 0
    %s66 = ssub.s32 %s62, %s65
    %p67 = scmp.eq.s32.totalorder %s66, 0
    %s69 = sadd.s32 %s68, 1
    %s70 = scalar_select %p67, %s68, %s69
    %p73 = pneg %p67
    %p74 = scmp.eq.s32.totalorder %s8, 1
    %p75 = por %p73, %p74
    %p76 = scmp.ne.s32.totalorder %s68, %s71
    %p77 = scmp.eq.s32.totalorder %s8, 0
    %p78 = por %p76, %p77
    %p79 = scmp.ne.s32.totalorder %s68, %s71
    %p80 = scmp.eq.s32.totalorder %s13, 1
    %p81 = por %p79, %p80
    %p82 = scmp.ne.s32.totalorder %s71, %s72
    %p83 = scmp.eq.s32.totalorder %s13, 0
    %p84 = por %p82, %p83
    %p85 = scmp.ne.s32.totalorder %s71, %s72
    %p86 = scmp.eq.s32.totalorder %s14, 1
    %p87 = por %p85, %p86
    %p89 = scmp.ne.s32.totalorder %s72, %s88
    %p90 = scmp.eq.s32.totalorder %s14, 0
    %p91 = por %p89, %p90
    %s92 = ssub.s32 %s15, %s27
    %p93 = scmp.eq.s32.totalorder %s92, 0
    %s95 = sadd.s32 %s94, 1
    %s96 = scalar_select %p93, %s94, %s95
    %p99 = pneg %p93
    %p100 = scmp.eq.s32.totalorder %s8, 1
    %p101 = por %p99, %p100
    %p102 = scmp.ne.s32.totalorder %s94, %s97
    %p103 = scmp.eq.s32.totalorder %s8, 0
    %p104 = por %p102, %p103
    %p105 = scmp.ne.s32.totalorder %s94, %s97
    %p106 = scmp.eq.s32.totalorder %s13, 1
    %p107 = por %p105, %p106
    %p108 = scmp.ne.s32.totalorder %s97, %s98
    %p109 = scmp.eq.s32.totalorder %s13, 0
    %p110 = por %p108, %p109
    %p111 = scmp.ne.s32.totalorder %s97, %s98
    %p112 = scmp.eq.s32.totalorder %s14, 1
    %p113 = por %p111, %p112
    %p115 = scmp.ne.s32.totalorder %s98, %s114
    %p116 = scmp.eq.s32.totalorder %s14, 0
    %p117 = por %p115, %p116
    %p118 = scmp.le.s32.totalorder 1, %s8
    %p119 = scmp.lt.s32.totalorder %s8, 3
    %p120 = pnand %p118, %p119
    %p121 = pneg %p120
    // Predicated region
    $region9: #{wing_loss.1} parent=5 // pred_check
      _
    $region10: #{wing_loss.1} parent=5 // pred_check_branch
      %123 = sbr.rel (%p120) target = $region12
    $region11: #{wing_loss.1} parent=5 // pred_region
      %s124 = ssub.s32 %s8, 1
    $region12: #{wing_loss.1} parent=5 // pred_fallthru
      _
    %p125 = scmp.lt.s32.totalorder %s8, 2
    // Predicated region
    $region13: #{wing_loss.1} parent=5 // pred_check
      %p126 = pneg %p125
    $region14: #{wing_loss.1} parent=5 // pred_check_branch
      %128 = sbr.rel (%p126) target = $region16
    $region15: #{wing_loss.1} parent=5 // pred_region
      // Predicated region
      $region17: #{wing_loss.1} parent=15 // pred_check
        %p129 = pneg %p46
      $region18: #{wing_loss.1} parent=15 // pred_check_branch
        %131 = sbr.rel (%p129) target = $region20
      $region19: #{wing_loss.1} parent=15 // pred_region
        %s132 = sadd.s32 %s15, %s16
        %p133 = scmp.lt.s32.totalorder %s132, 0
        %s134 = scalar_select %p133, %s132, 0
        %s135 = smul.u32 2, %s134
        %p136 = scmp.lt.s32.totalorder %s135, 1
        %s137 = scalar_select %p136, %s135, 1
        %s138 = smul.addr %s137, 8
        %s139 = scalar_lea.vmem %s0, %s138
        %s140 = sadd.s32 %s15, %s16
        %p141 = scmp.lt.s32.totalorder %s140, 0
        %s142 = scalar_select %p141, %s140, 0
        %s143 = smul.u32 2, %s142
      $region20: #{wing_loss.1} parent=15 // pred_fallthru
        _
      // Predicated region
      $region21: #{wing_loss.1} parent=15 // pred_check
        %p144 = pneg %p78
      $region22: #{wing_loss.1} parent=15 // pred_check_branch
        %146 = sbr.rel (%p144) target = $region24
      $region23: #{wing_loss.1} parent=15 // pred_region
        %s147 = sadd.s32 %s15, %s16
        %p148 = scmp.lt.s32.totalorder %s147, 0
        %s149 = scalar_select %p148, %s147, 0
        %s150 = smul.u32 2, %s149
        %p151 = scmp.lt.s32.totalorder %s150, 1
        %s152 = scalar_select %p151, %s150, 1
        %s153 = smul.addr %s152, 8
        %s154 = scalar_lea.vmem %s1, %s153
        %s155 = sadd.s32 %s15, %s16
        %p156 = scmp.lt.s32.totalorder %s155, 0
        %s157 = scalar_select %p156, %s155, 0
        %s158 = smul.u32 2, %s157
      $region24: #{wing_loss.1} parent=15 // pred_fallthru
        _
    $region16: #{wing_loss.1} parent=5 // pred_fallthru
      _
    %p159 = scmp.le.s32.totalorder 1, %s8
    %p160 = scmp.lt.s32.totalorder %s8, 3
    %p161 = pnand %p159, %p160
    %p162 = pneg %p161
    // Predicated region
    $region25: #{wing_loss.1} parent=5 // pred_check
      _
    $region26: #{wing_loss.1} parent=5 // pred_check_branch
      %164 = sbr.rel (%p161) target = $region28
    $region27: #{wing_loss.1} parent=5 // pred_region
      %s165 = ssub.s32 %s8, 1
      %s166 = sadd.s32 %s17, %s18
      %p167 = scmp.lt.s32.totalorder %s166, 0
      %s168 = scalar_select %p167, %s166, 0
      %s169 = smul.u32 2, %s168
      %p170 = scmp.lt.s32.totalorder %s169, 1
      %s171 = scalar_select %p170, %s169, 1
      %s172 = smul.addr %s171, 8
      %s173 = scalar_lea.vmem %s0, %s172
      %p174 = pneg %p52
      %p175 = pneg %p49
      %s176 = sadd.s32 %s17, %s18
      %p177 = scmp.lt.s32.totalorder %s176, 0
      %s178 = scalar_select %p177, %s176, 0
      %s179 = smul.u32 2, %s178
      %p180 = scmp.lt.s32.totalorder %s179, 1
      %s181 = scalar_select %p180, %s179, 1
      %s182 = smul.addr %s181, 8
      %s183 = scalar_lea.vmem %s1, %s182
      %p184 = pneg %p84
      %p185 = pneg %p81
      %p186 = pneg %p110
      %p187 = pneg %p107
      %p188 = scmp.lt.s32.totalorder %s17, 1
      %s189 = scalar_select %p188, %s17, 1
      %s190 = smul.addr %s189, 8
      %s191 = scalar_lea.vmem %s2, %s190
      %s192 = sadd.s32 %s17, %s18
      %p193 = scmp.lt.s32.totalorder %s192, 0
      %s194 = scalar_select %p193, %s192, 0
      %s195 = smul.u32 2, %s194
      %p196 = scmp.lt.s32.totalorder %s195, 1
      %s197 = scalar_select %p196, %s195, 1
      %s198 = smul.addr %s197, 8
      %s199 = scalar_lea.vmem %s0, %s198
      %s200 = sadd.s32 %s17, %s18
      %p201 = scmp.lt.s32.totalorder %s200, 0
      %s202 = scalar_select %p201, %s200, 0
      %s203 = smul.u32 2, %s202
      %s204 = sadd.s32 %s17, %s18
      %p205 = scmp.lt.s32.totalorder %s204, 0
      %s206 = scalar_select %p205, %s204, 0
      %s207 = smul.u32 2, %s206
      %p208 = scmp.lt.s32.totalorder %s207, 1
      %s209 = scalar_select %p208, %s207, 1
      %s210 = smul.addr %s209, 8
      %s211 = scalar_lea.vmem %s1, %s210
      %s212 = sadd.s32 %s17, %s18
      %p213 = scmp.lt.s32.totalorder %s212, 0
      %s214 = scalar_select %p213, %s212, 0
      %s215 = smul.u32 2, %s214
      %p216 = scmp.lt.s32.totalorder %s17, 1
      %s217 = scalar_select %p216, %s17, 1
      %s218 = smul.addr %s217, 8
      %s219 = scalar_lea.vmem %s2, %s218
      %p220 = scmp.eq.s32.totalorder %s18, 0
      // Predicated region
      $region29: #{wing_loss.1} parent=27 // pred_check
        %p221 = pneg %p220
      $region30: #{wing_loss.1} parent=27 // pred_check_branch
        %223 = sbr.rel (%p221) target = $region32
      $region31: #{wing_loss.1} parent=27 // pred_region
        %224 = vst [vmem:[%s219] sm:$0xff] 0.0
      $region32: #{wing_loss.1} parent=27 // pred_fallthru
        _
      %v225 = vld [vmem:[%s199] sm:$0xff]
      %v226 = vld [vmem:[%s199 + $0x8] sm:$0xff]
      %v227 = vld [vmem:[%s211] sm:$0xff]
      %v228 = vld [vmem:[%s211 + $0x8] sm:$0xff]
      %s229 = sadd.s32 %s17, %s18
      %s230 = smul.u32 %s229, 16
      %v231 = vlaneseq
      %v232 = vshrl.u32 %v231, 7
      %v233 = vadd.s32 %v232, 8
      %v234 = vstv %s230
      %v235 = vadd.s32 %v234, %v232
      %v236 = vadd.s32 %v234, %v233
      %vm237 = vcmp.lt.s32.totalorder %v235, 16
      %vm238 = vcmp.lt.s32.totalorder %v236, 16
      %v239 = vsel %vm237, %v225, 0.0
      %v240 = vsel %vm238, %v226, 0.0
      %v241 = vsel %vm237, %v227, -1.0
      %v242 = vsel %vm238, %v228, -1.0
      %vm243 = vcmp.eq.f32.partialorder %v241, -1.0
      %vm244 = vcmp.eq.f32.partialorder %v242, -1.0
      %v245 = vsub.f32 %v239, %v241
      %v246 = vsub.f32 %v240, %v242
      %v247 = vand.u32 2147483647, %v245
      %v248 = vand.u32 2147483647, %v246
      %v249 = vsel %vm243, 0.0, %v247
      %v250 = vsel %vm244, 0.0, %v248
      %vm251 = vcmp.lt.f32.partialorder %v249, 10.0
      %vm252 = vcmp.lt.f32.partialorder %v250, 10.0
      %v253 = vmul.f32 %v249, 0.5
      %v254 = vmul.f32 %v250, 0.5
      %v255 = vadd.f32 %v253, 1.0
      %v256 = vlog2.pop %v255
      %v257 = vmul.f32 %v256, 0.6931472
      %v258 = vmul.f32 -0.5, %v253
      %v259 = vadd.f32 %v258, 1.0
      %v260 = vmul.f32 %v259, %v253
      %v261 = vand.u32 2147483647, %v253
      %vm262 = vcmp.lt.f32.partialorder %v261, 0.0004427343
      %v263 = vsel %vm262, %v260, %v257
      %v264 = vadd.f32 %v254, 1.0
      %v265 = vlog2.pop %v264
      %v266 = vmul.f32 %v265, 0.6931472
      %v267 = vmul.f32 -0.5, %v254
      %v268 = vadd.f32 %v267, 1.0
      %v269 = vmul.f32 %v268, %v254
      %v270 = vand.u32 2147483647, %v254
      %vm271 = vcmp.lt.f32.partialorder %v270, 0.0004427343
      %v272 = vsel %vm271, %v269, %v266
      %v273 = vmul.f32 %v263, 10.0
      %v274 = vmul.f32 %v272, 10.0
      %v275 = vsub.f32 %v249, -7.917595
      %v276 = vsub.f32 %v250, -7.917595
      %v277 = vsel %vm251, %v273, %v275
      %v278 = vsel %vm252, %v274, %v276
      %v279 = vld [vmem:[%s219] sm:$0xff]
      %v280 = vadd.f32 %v277, %v278
      %v281 = vadd.f32 %v279, %v280
      %282 = vst [vmem:[%s219] sm:$0xff] %v281
      %p283 = scmp.lt.s32.totalorder %s17, 1
      %s284 = scalar_select %p283, %s17, 1
      %s285 = smul.addr %s284, 8
      %s286 = scalar_lea.vmem %s2, %s285
      // Predicated region
      $region33: #{wing_loss.1} parent=27 // pred_check
        %p287 = pneg %p107
      $region34: #{wing_loss.1} parent=27 // pred_check_branch
        %289 = sbr.rel (%p287) target = $region36
      $region35: #{wing_loss.1} parent=27 // pred_region
        _
      $region36: #{wing_loss.1} parent=27 // pred_fallthru
        _
    $region28: #{wing_loss.1} parent=5 // pred_fallthru
      _
    %p290 = scmp.le.s32.totalorder 2, %s8
    // Predicated region
    $region37: #{wing_loss.1} parent=5 // pred_check
      %p291 = pneg %p290
    $region38: #{wing_loss.1} parent=5 // pred_check_branch
      %293 = sbr.rel (%p291) target = $region40
    $region39: #{wing_loss.1} parent=5 // pred_region
      %s294 = ssub.s32 %s8, 2
      // Predicated region
      $region41: #{wing_loss.1} parent=39 // pred_check
        %p295 = pneg %p113
      $region42: #{wing_loss.1} parent=39 // pred_check_branch
        %297 = sbr.rel (%p295) target = $region44
      $region43: #{wing_loss.1} parent=39 // pred_region
        %p298 = scmp.lt.s32.totalorder %s19, 1
        %s299 = scalar_select %p298, %s19, 1
        %s300 = smul.addr %s299, 8
        %s301 = scalar_lea.vmem %s2, %s300
      $region44: #{wing_loss.1} parent=39 // pred_fallthru
        _
    $region40: #{wing_loss.1} parent=5 // pred_fallthru
      _
  $region6: #{wing_loss.1} parent=0 // loop_footer
    %s12 = sadd.s32 1, %s8
  $region7: #{wing_loss.1} parent=0 // loop_footer_branch
    %7 = sbr.rel target = $region3
  $region8: #{wing_loss.1} parent=0 // loop_exit
    _

</llo_original>
